<compile_context>
chip_gen: v5e
topology: v5e:2x2
jax: 0.10.0
libtpu: 0.0.40
codegen_flags: <defaults>
</compile_context>

<pallas_src>
import jax
import jax.numpy as jnp
from jax.experimental import pallas as pl
from jax.experimental.pallas import tpu as pltpu


# ----------------------------------------------------------------------------- helpers
def _round_up(x, m):
    return ((x + m - 1) // m) * m


def _hw_params():
    """Generation-aware (num_cores, input_budget, vmem_limit)."""
    vmem_bytes = None
    try:
        vmem_bytes = int(pltpu.get_tpu_info().vmem_capacity_bytes)
    except Exception:
        vmem_bytes = None
    kind = ""
    try:
        kind = jax.devices()[0].device_kind.lower()
    except Exception:
        pass
    is_v7 = "v7" in kind
    if vmem_bytes is None:
        vmem_bytes = (64 << 20) if is_v7 else (128 << 20)   # v7x: 64 MiB/TC, else 128 MiB
    num_cores = 2 if is_v7 else 1                           # v7x has 2 TCs per chip
    vmem_limit = min(vmem_bytes * 3 // 4, 96 << 20)         # 96 MiB v5e/v6e, 48 MiB v7x
    input_budget = min(vmem_bytes * 3 // 8, 48 << 20)       # 48 MiB v5e/v6e, 24 MiB v7x
    return num_cores, input_budget, vmem_limit


# ----------------------------------------------------------------------------- kernel
def _make_vae_loss_kernel(masked, n_rows, n_latent_rows):
    """Closure over: masked flag, valid wide rows (B), valid latent rows (Bl)."""

    def kernel(*refs):
        if masked:
            (recon_ref, feat_ref, mask_ref, mu_ref, lv_ref,
             out_ref, acc_rec, acc_kld) = refs
        else:
            (recon_ref, feat_ref, mu_ref, lv_ref,
             out_ref, acc_rec, acc_kld) = refs

        i = pl.program_id(1)                                  # step within this core
        blk = pl.program_id(0) * pl.num_programs(1) + i       # global row-block index

        @pl.when(i == 0)
        def _init():
            acc_rec[...] = jnp.zeros_like(acc_rec)
            acc_kld[...] = jnp.zeros_like(acc_kld)

        tb, d = recon_ref.shape
        tbl, ll = mu_ref.shape

        # ---- reconstruction term (MSE, reduction='sum'); per-tile cast to f32 ----
        diff = recon_ref[...].astype(jnp.float32) - feat_ref[...].astype(jnp.float32)
        if masked:
            diff = diff * (1.0 - mask_ref[...].astype(jnp.float32))  # inverse_mask
        sq = diff * diff
        rows = blk * tb + jax.lax.broadcasted_iota(jnp.int32, (tb, 1), 0)
        sq = jnp.where(rows < n_rows, sq, 0.0)       # remainder / phantom-step mask
        if tb % 8 == 0:
            # groups-of-8-sublanes partial sums: pure VPU adds per step.
            acc_rec[...] += jnp.sum(sq.reshape(tb // 8, 8, d), axis=0)
        else:
            acc_rec[0:1, :] += jnp.sum(sq, axis=0, keepdims=True)

        # ---- KLD elementwise term: 1 + log_var - mu^2 - exp(log_var) ----
        lv = lv_ref[...].astype(jnp.float32)
        mu = mu_ref[...].astype(jnp.float32)
        kelem = 1.0 + lv - mu * mu - jnp.exp(lv)
        lrows = blk * tbl + jax.lax.broadcasted_iota(jnp.int32, (tbl, 1), 0)
        kelem = jnp.where(lrows < n_latent_rows, kelem, 0.0)
        if tbl % 8 == 0:
            acc_kld[...] += jnp.sum(kelem.reshape(tbl // 8, 8, ll), axis=0)
        else:
            acc_kld[0:1, :] += jnp.sum(kelem, axis=0, keepdims=True)

        @pl.when(i == pl.num_programs(1) - 1)
        def _finalize():
            # single cross-lane reduce per core (XLU), once in the epilogue.
            out_ref[0, 0] = jnp.sum(acc_rec[...]) - 0.5 * jnp.sum(acc_kld[...])

    return kernel


# ----------------------------------------------------------------------------- wrapper
def vae_loss(outputs, batch, masked: bool = False, row_block: int = 1024,
             vmem_limit_bytes=None):
    """JAX/Pallas equivalent of VAELoss.forward (MSE-sum reconstruction loss).

    outputs: {'reconstructed': (B, D), 'mu': (B, L), 'log_var': (B, L)}
    batch:   {'features': (B, D) [, 'missing_mask': (B, D)]}
    Returns a scalar float32.
    """
    recon = outputs["reconstructed"]
    feat = batch["features"]
    mu = outputs["mu"]
    log_var = outputs["log_var"]
    mask = batch["missing_mask"] if masked else None

    B, D = recon.shape
    L = mu.shape[-1]

    num_cores, input_budget, derived_limit = _hw_params()
    if vmem_limit_bytes is None:
        vmem_limit_bytes = derived_limit

    # ---- batch tile: biggest double-buffered tile that fits the VMEM budget ----
    bytes_per_row = D * (recon.dtype.itemsize + feat.dtype.itemsize)
    if masked:
        bytes_per_row += D * mask.dtype.itemsize
    bytes_per_row += L * (mu.dtype.itemsize + log_var.dtype.itemsize)
    align = 32 if masked else 8          # 32 keeps int8 mask tiles natively packed
    max_rows = max(align, (input_budget // (2 * bytes_per_row)) // align * align)
    tb = min(int(row_block), int(max_rows), B)
    tb = (tb // align) * align
    if tb <= 0:
        tb = B                           # tiny batch: one full-extent block

    nblocks = (B + tb - 1) // tb         # no wrapper-side padding copies
    num_cores = min(num_cores, nblocks)
    steps = (nblocks + num_cores - 1) // num_cores
    last_blk = nblocks - 1

    # ---- latent lane-density: free row->lane fold when it is a pure reshape ----
    rf = 128 // L if (0 < L < 128 and 128 % L == 0) else 1
    if rf > 1 and B % rf == 0 and tb % (8 * rf) == 0:
        Bl, Ll, tbl = B // rf, rf * L, tb // rf
        mu = mu.reshape(Bl, Ll)
        log_var = log_var.reshape(Bl, Ll)
    else:
        Bl, Ll, tbl = B, L, tb

    def blk_idx(c, i):
        # clamp the phantom trailing step (odd block count on the 2-TC split);
        # its rows are >= B so the in-kernel mask zeroes its contribution.
        return jnp.minimum(c * steps + i, last_blk)

    wide = pl.BlockSpec((tb, D), lambda c, i: (blk_idx(c, i), 0))
    narrow = pl.BlockSpec((tbl, Ll), lambda c, i: (blk_idx(c, i), 0))
    out_spec = pl.BlockSpec((1, 1), lambda c, i: (c, 0), memory_space=pltpu.SMEM)

    kernel = _make_vae_loss_kernel(masked, B, Bl)
    if masked:
        operands = (recon, feat, mask, mu, log_var)
        in_specs = [wide, wide, wide, narrow, narrow]
    else:
        operands = (recon, feat, mu, log_var)
        in_specs = [wide, wide, narrow, narrow]

    bytes_accessed = sum(int(x.size) * x.dtype.itemsize for x in operands) + 4 * num_cores
    cost = pl.CostEstimate(
        flops=int((4 if masked else 3) * B * D + 5 * B * L),
        transcendentals=int(B * L),
        bytes_accessed=int(bytes_accessed),
    )

    partials = pl.pallas_call(
        kernel,
        out_shape=jax.ShapeDtypeStruct((num_cores, 1), jnp.float32),
        grid_spec=pltpu.PrefetchScalarGridSpec(
            num_scalar_prefetch=0,
            grid=(num_cores, steps),
            in_specs=in_specs,
            out_specs=out_spec,
            scratch_shapes=[
                pltpu.VMEM((8, D), jnp.float32),    # reconstruction partial sums
                pltpu.VMEM((8, Ll), jnp.float32),   # KLD partial sums
            ],
        ),
        compiler_params=pltpu.CompilerParams(
            dimension_semantics=("parallel", "arbitrary"),
            vmem_limit_bytes=int(vmem_limit_bytes),
        ),
        cost_estimate=cost,
    )(*operands)

    return jnp.sum(partials)   # sum per-core partials (v7x: 2; v5e/v6e: 1)


# ----------------------------------------------------------------------------- reference + demo
def _reference(outputs, batch, masked=False):
    recon = outputs["reconstructed"].astype(jnp.float32)
    feat = batch["features"].astype(jnp.float32)
    mu = outputs["mu"].astype(jnp.float32)
    lv = outputs["log_var"].astype(jnp.float32)
    if masked:
        keep = 1.0 - batch["missing_mask"].astype(jnp.float32)
        rec = jnp.sum((keep * (recon - feat)) ** 2)
    else:
        rec = jnp.sum((recon - feat) ** 2)
    kld = -0.5 * jnp.sum(1.0 + lv - mu * mu - jnp.exp(lv))
    return rec + kld


if __name__ == "__main__":
    key = jax.random.PRNGKey(0)
    k1, k2, k3, k4, k5, k6, k7, k8 = jax.random.split(key, 8)

    # Small shapes; B=72 deliberately not a multiple of the 32-row masked tile.
    B, D, L = 72, 128, 32
    outputs = {
        "reconstructed": jax.random.normal(k1, (B, D), dtype=jnp.float32),
        "mu": jax.random.normal(k2, (B, L), dtype=jnp.float32),
        "log_var": 0.1 * jax.random.normal(k3, (B, L), dtype=jnp.float32),
    }
    batch = {
        "features": jax.random.normal(k4, (B, D), dtype=jnp.float32),
        "missing_mask": (jax.random.uniform(k5, (B, D)) < 0.25).astype(jnp.int8),
    }

    # 1) unmasked, single-tile grid.
    loss = vae_loss(outputs, batch, masked=False)
    jax.block_until_ready(loss)
    ref = _reference(outputs, batch, masked=False)
    assert jnp.allclose(loss, ref, rtol=1e-5, atol=1e-3), (loss, ref)

    # 2) masked, small row_block -> multi-step grid, partial last block, latent fold.
    loss_m = vae_loss(outputs, batch, masked=True, row_block=32)
    jax.block_until_ready(loss_m)
    ref_m = _reference(outputs, batch, masked=True)
    assert jnp.allclose(loss_m, ref_m, rtol=1e-5, atol=1e-3), (loss_m, ref_m)

    # 3) bf16 inputs, default tiling: per-tile casts inside the kernel, no upcast copies.
    outputs_bf = {k: v.astype(jnp.bfloat16) for k, v in outputs.items()}
    batch_bf = {"features": batch["features"].astype(jnp.bfloat16),
                "missing_mask": batch["missing_mask"]}
    loss_bf = vae_loss(outputs_bf, batch_bf, masked=True)
    jax.block_until_ready(loss_bf)
    ref_bf = _reference(outputs_bf, batch_bf, masked=True)
    assert jnp.allclose(loss_bf, ref_bf, rtol=1e-3, atol=1e-1), (loss_bf, ref_bf)

    # 4) odd shapes: B=70, L=24 -> lane-sparse latent path + remainder-row masking.
    B2, L2 = 70, 24
    outputs2 = {
        "reconstructed": jax.random.normal(k6, (B2, D), dtype=jnp.float32),
        "mu": jax.random.normal(k7, (B2, L2), dtype=jnp.float32),
        "log_var": 0.1 * jax.random.normal(k8, (B2, L2), dtype=jnp.float32),
    }
    batch2 = {"features": jax.random.normal(k1, (B2, D), dtype=jnp.float32)}
    loss2 = vae_loss(outputs2, batch2, masked=False, row_block=16)
    jax.block_until_ready(loss2)
    ref2 = _reference(outputs2, batch2, masked=False)
    assert jnp.allclose(loss2, ref2, rtol=1e-5, atol=1e-3), (loss2, ref2)

    print("KERNEL_OK")
</pallas_src>

<mosaic_0001>
module attributes {stable_mosaic.version = 11 : i64} {
  func.func @kernel(%arg0: i32, %arg1: i32, %arg2: memref<72x128xf32, #tpu.memory_space<vmem>>, %arg3: memref<72x128xf32, #tpu.memory_space<vmem>>, %arg4: memref<72x32xf32, #tpu.memory_space<vmem>>, %arg5: memref<72x32xf32, #tpu.memory_space<vmem>>, %arg6: memref<1x1xf32, #tpu.memory_space<smem>>, %arg7: memref<8x128xf32, #tpu.memory_space<vmem>>, %arg8: memref<8x32xf32, #tpu.memory_space<vmem>>) attributes {dimension_semantics = [#tpu.dimension_semantics<parallel>, #tpu.dimension_semantics<arbitrary>], iteration_bounds = array<i64: 1, 1>, scalar_prefetch = 0 : i64, scratch_operands = 2 : i64, tpu.core_type = #tpu.core_type<tc>, window_params = [{transform_indices = @transform_0, window_bounds = array<i64: 72, 128>}, {transform_indices = @transform_1, window_bounds = array<i64: 72, 128>}, {transform_indices = @transform_2, window_bounds = array<i64: 72, 32>}, {transform_indices = @transform_3, window_bounds = array<i64: 72, 32>}, {transform_indices = @transform_4, window_bounds = array<i64: 1, 1>}]} {
    %c1_i32 = arith.constant 1 : i32
    %0 = arith.muli %arg0, %c1_i32 : i32
    %1 = arith.addi %0, %arg1 : i32
    %c0_i32 = arith.constant 0 : i32
    %2 = arith.cmpi eq, %arg1, %c0_i32 : i32
    %3 = arith.extui %2 : i1 to i32
    %c0_i32_0 = arith.constant 0 : i32
    %4 = arith.cmpi ne, %3, %c0_i32_0 : i32
    scf.if %4 {
      %cst_25 = arith.constant 0.000000e+00 : f32
      %50 = vector.broadcast %cst_25 : f32 to vector<8x128xf32>
      %c0_26 = arith.constant 0 : index
      %c0_27 = arith.constant 0 : index
      %51 = vector.load %arg7[%c0_26, %c0_27] : memref<8x128xf32, #tpu.memory_space<vmem>>, vector<8x128xf32>
      tpu.vector_store %arg7[%c0_26, %c0_27], %50 {strides = array<i32>} : memref<8x128xf32, #tpu.memory_space<vmem>>, vector<8x128xf32>,
      %cst_28 = arith.constant 0.000000e+00 : f32
      %52 = vector.broadcast %cst_28 : f32 to vector<8x32xf32>
      %c0_29 = arith.constant 0 : index
      %c0_30 = arith.constant 0 : index
      %53 = vector.load %arg8[%c0_29, %c0_30] : memref<8x32xf32, #tpu.memory_space<vmem>>, vector<8x32xf32>
      tpu.vector_store %arg8[%c0_29, %c0_30], %52 {strides = array<i32>} : memref<8x32xf32, #tpu.memory_space<vmem>>, vector<8x32xf32>,
    } else {
    }
    %c0 = arith.constant 0 : index
    %c0_1 = arith.constant 0 : index
    %5 = vector.load %arg2[%c0, %c0_1] : memref<72x128xf32, #tpu.memory_space<vmem>>, vector<72x128xf32>
    %c0_2 = arith.constant 0 : index
    %c0_3 = arith.constant 0 : index
    %6 = vector.load %arg3[%c0_2, %c0_3] : memref<72x128xf32, #tpu.memory_space<vmem>>, vector<72x128xf32>
    %7 = arith.subf %5, %6 : vector<72x128xf32>
    %8 = arith.mulf %7, %7 : vector<72x128xf32>
    %c72_i32 = arith.constant 72 : i32
    %9 = arith.muli %1, %c72_i32 : i32
    %10 = tpu.iota {dimensions = array<i32: 0>} : vector<72x1xi32>
    %11 = vector.broadcast %9 : i32 to vector<72x1xi32>
    %12 = arith.addi %11, %10 : vector<72x1xi32>
    %c72_i32_4 = arith.constant 72 : i32
    %13 = vector.broadcast %c72_i32_4 : i32 to vector<72x1xi32>
    %14 = arith.cmpi slt, %12, %13 : vector<72x1xi32>
    %cst = arith.constant 0.000000e+00 : f32
    %15 = vector.shape_cast %14 : vector<72x1xi1> to vector<72x1xi1>
    %16 = vector.broadcast %15 : vector<72x1xi1> to vector<72x128xi1>
    %17 = vector.broadcast %cst : f32 to vector<72x128xf32>
    %18 = arith.select %16, %8, %17 : vector<72x128xi1>, vector<72x128xf32>
    %c0_5 = arith.constant 0 : index
    %c0_6 = arith.constant 0 : index
    %19 = vector.load %arg7[%c0_5, %c0_6] : memref<8x128xf32, #tpu.memory_space<vmem>>, vector<8x128xf32>
    %20 = vector.shape_cast %18 : vector<72x128xf32> to vector<9x8x128xf32>
    %cst_7 = arith.constant dense<0.000000e+00> : vector<8x128xf32>
    %21 = vector.multi_reduction <add>, %20, %cst_7 [0] : vector<9x8x128xf32> to vector<8x128xf32>
    %22 = arith.addf %19, %21 : vector<8x128xf32>
    %c0_8 = arith.constant 0 : index
    %c0_9 = arith.constant 0 : index
    %23 = vector.load %arg7[%c0_8, %c0_9] : memref<8x128xf32, #tpu.memory_space<vmem>>, vector<8x128xf32>
    tpu.vector_store %arg7[%c0_8, %c0_9], %22 {strides = array<i32>} : memref<8x128xf32, #tpu.memory_space<vmem>>, vector<8x128xf32>,
    %c0_10 = arith.constant 0 : index
    %c0_11 = arith.constant 0 : index
    %24 = vector.load %arg5[%c0_10, %c0_11] : memref<72x32xf32, #tpu.memory_space<vmem>>, vector<72x32xf32>
    %c0_12 = arith.constant 0 : index
    %c0_13 = arith.constant 0 : index
    %25 = vector.load %arg4[%c0_12, %c0_13] : memref<72x32xf32, #tpu.memory_space<vmem>>, vector<72x32xf32>
    %cst_14 = arith.constant 1.000000e+00 : f32
    %26 = vector.broadcast %cst_14 : f32 to vector<72x32xf32>
    %27 = arith.addf %26, %24 : vector<72x32xf32>
    %28 = arith.mulf %25, %25 : vector<72x32xf32>
    %29 = arith.subf %27, %28 : vector<72x32xf32>
    %30 = math.exp %24 : vector<72x32xf32>
    %31 = arith.subf %29, %30 : vector<72x32xf32>
    %c72_i32_15 = arith.constant 72 : i32
    %32 = arith.muli %1, %c72_i32_15 : i32
    %33 = tpu.iota {dimensions = array<i32: 0>} : vector<72x1xi32>
    %34 = vector.broadcast %32 : i32 to vector<72x1xi32>
    %35 = arith.addi %34, %33 : vector<72x1xi32>
    %c72_i32_16 = arith.constant 72 : i32
    %36 = vector.broadcast %c72_i32_16 : i32 to vector<72x1xi32>
    %37 = arith.cmpi slt, %35, %36 : vector<72x1xi32>
    %cst_17 = arith.constant 0.000000e+00 : f32
    %38 = vector.shape_cast %37 : vector<72x1xi1> to vector<72x1xi1>
    %39 = vector.broadcast %38 : vector<72x1xi1> to vector<72x32xi1>
    %40 = vector.broadcast %cst_17 : f32 to vector<72x32xf32>
    %41 = arith.select %39, %31, %40 : vector<72x32xi1>, vector<72x32xf32>
    %c0_18 = arith.constant 0 : index
    %c0_19 = arith.constant 0 : index
    %42 = vector.load %arg8[%c0_18, %c0_19] : memref<8x32xf32, #tpu.memory_space<vmem>>, vector<8x32xf32>
    %43 = vector.shape_cast %41 : vector<72x32xf32> to vector<9x8x32xf32>
    %cst_20 = arith.constant dense<0.000000e+00> : vector<8x32xf32>
    %44 = vector.multi_reduction <add>, %43, %cst_20 [0] : vector<9x8x32xf32> to vector<8x32xf32>
    %45 = arith.addf %42, %44 : vector<8x32xf32>
    %c0_21 = arith.constant 0 : index
    %c0_22 = arith.constant 0 : index
    %46 = vector.load %arg8[%c0_21, %c0_22] : memref<8x32xf32, #tpu.memory_space<vmem>>, vector<8x32xf32>
    tpu.vector_store %arg8[%c0_21, %c0_22], %45 {strides = array<i32>} : memref<8x32xf32, #tpu.memory_space<vmem>>, vector<8x32xf32>,
    %c0_i32_23 = arith.constant 0 : i32
    %47 = arith.cmpi eq, %arg1, %c0_i32_23 : i32
    %48 = arith.extui %47 : i1 to i32
    %c0_i32_24 = arith.constant 0 : i32
    %49 = arith.cmpi ne, %48, %c0_i32_24 : i32
    scf.if %49 {
      %c0_25 = arith.constant 0 : index
      %c0_26 = arith.constant 0 : index
      %50 = vector.load %arg7[%c0_25, %c0_26] : memref<8x128xf32, #tpu.memory_space<vmem>>, vector<8x128xf32>
      %51 = vector.shape_cast %50 : vector<8x128xf32> to vector<1x8x128xf32>
      %cst_27 = arith.constant dense<0.000000e+00> : vector<1xf32>
      %52 = vector.multi_reduction <add>, %51, %cst_27 [1, 2] : vector<1x8x128xf32> to vector<1xf32>
      %53 = vector.shape_cast %52 : vector<1xf32> to vector<1x1x1xf32>
      %54 = vector.extract %53[0, 0, 0] : f32 from vector<1x1x1xf32>
      %c0_28 = arith.constant 0 : index
      %c0_29 = arith.constant 0 : index
      %55 = vector.load %arg8[%c0_28, %c0_29] : memref<8x32xf32, #tpu.memory_space<vmem>>, vector<8x32xf32>
      %56 = vector.shape_cast %55 : vector<8x32xf32> to vector<1x8x32xf32>
      %cst_30 = arith.constant dense<0.000000e+00> : vector<1xf32>
      %57 = vector.multi_reduction <add>, %56, %cst_30 [1, 2] : vector<1x8x32xf32> to vector<1xf32>
      %58 = vector.shape_cast %57 : vector<1xf32> to vector<1x1x1xf32>
      %59 = vector.extract %58[0, 0, 0] : f32 from vector<1x1x1xf32>
      %cst_31 = arith.constant 5.000000e-01 : f32
      %60 = arith.mulf %cst_31, %59 : f32
      %61 = arith.subf %54, %60 : f32
      %c0_32 = arith.constant 0 : index
      %c0_33 = arith.constant 0 : index
      %62 = memref.load %arg6[%c0_32, %c0_33] : memref<1x1xf32, #tpu.memory_space<smem>>
      memref.store %61, %arg6[%c0_32, %c0_33] : memref<1x1xf32, #tpu.memory_space<smem>>
    } else {
    }
    return
  }
  func.func @transform_0(%arg0: i32, %arg1: i32) -> (i32, i32) {
    %c1_i32 = arith.constant 1 : i32
    %0 = arith.muli %arg0, %c1_i32 : i32
    %1 = arith.addi %0, %arg1 : i32
    %c0_i32 = arith.constant 0 : i32
    %2 = arith.minsi %1, %c0_i32 : i32
    %c0_i32_0 = arith.constant 0 : i32
    %c0_i32_1 = arith.constant 0 : i32
    return %2, %c0_i32_0 : i32, i32
  }
  func.func @transform_1(%arg0: i32, %arg1: i32) -> (i32, i32) {
    %c1_i32 = arith.constant 1 : i32
    %0 = arith.muli %arg0, %c1_i32 : i32
    %1 = arith.addi %0, %arg1 : i32
    %c0_i32 = arith.constant 0 : i32
    %2 = arith.minsi %1, %c0_i32 : i32
    %c0_i32_0 = arith.constant 0 : i32
    %c0_i32_1 = arith.constant 0 : i32
    return %2, %c0_i32_0 : i32, i32
  }
  func.func @transform_2(%arg0: i32, %arg1: i32) -> (i32, i32) {
    %c1_i32 = arith.constant 1 : i32
    %0 = arith.muli %arg0, %c1_i32 : i32
    %1 = arith.addi %0, %arg1 : i32
    %c0_i32 = arith.constant 0 : i32
    %2 = arith.minsi %1, %c0_i32 : i32
    %c0_i32_0 = arith.constant 0 : i32
    %c0_i32_1 = arith.constant 0 : i32
    return %2, %c0_i32_0 : i32, i32
  }
  func.func @transform_3(%arg0: i32, %arg1: i32) -> (i32, i32) {
    %c1_i32 = arith.constant 1 : i32
    %0 = arith.muli %arg0, %c1_i32 : i32
    %1 = arith.addi %0, %arg1 : i32
    %c0_i32 = arith.constant 0 : i32
    %2 = arith.minsi %1, %c0_i32 : i32
    %c0_i32_0 = arith.constant 0 : i32
    %c0_i32_1 = arith.constant 0 : i32
    return %2, %c0_i32_0 : i32, i32
  }
  func.func @transform_4(%arg0: i32, %arg1: i32) -> (i32, i32) {
    %c0_i32 = arith.constant 0 : i32
    %c0_i32_0 = arith.constant 0 : i32
    return %arg0, %c0_i32 : i32, i32
  }
}

</mosaic_0001>

<llo_original>
// kernel: tpu_custom_call.1
$region0: #{tpu_custom_call.1}
  #allocation0 [shape = 'u32[]', space=smem, size = 0x4, offset = 0x4, fixed_abs, tag = 'smem constant byte address 0x4 - core index']
  #allocation1 [shape = 'u32[72,128]{1,0:T(1,128)}', space=vmem, size = 0x9000, scoped, tag = 'internal scratch']
  #allocation2 [shape = 'f32[8,128]{1,0:T(8,128)}', space=vmem, size = 0x1000, scoped, tag = 'scratch operand']
  #allocation3 [shape = 'f32[8,32]{1,0:T(8,128)}', space=vmem, size = 0x1000, scoped, tag = 'scratch operand']
  %s0 = inlined_call_operand.vmem [shape: f32[72,128], index: 0, kind: input, shape index: {}]
  %s1 = inlined_call_operand.vmem [shape: f32[72,128], index: 1, kind: input, shape index: {}]
  %s2 = inlined_call_operand.vmem [shape: f32[72,32], index: 2, kind: input, shape index: {}]
  %s3 = inlined_call_operand.vmem [shape: f32[72,32], index: 3, kind: input, shape index: {}]
  %s4 = inlined_call_operand.hbm [shape: f32[1,1], index: 4, kind: output, shape index: {}]
  %s5 = sld [smem:[#allocation0]]
  $region34: #{tpu_custom_call.1} parent=0
    _
  %s7 = ssub.s32 1, %s5
  %s8 = scalar_select 0, %s7, %s5
  $region1: #{tpu_custom_call.1} parent=0
    #allocation4 [shape = 'u8[512]{0}', space=smem, size = 0x200, scoped, tag = 'output window, operand 0, single buffered']
    #allocation5 [shape = 's32[1]{0}', space=sflag, size = 0x4, scoped, tag = 'scoped memory for tpu_custom_call.1']
    %9 = vsyncpa [#allocation5], 0
    // Predicated region
    $region2: #{tpu_custom_call.1} parent=1 // pred_check
      _
    $region3: #{tpu_custom_call.1} parent=1 // pred_check_branch
      %11 = sbr.rel (0) target = $region5
    $region4: #{tpu_custom_call.1} parent=1 // pred_region
      %s12 = sadd.s32 0, 0
      %p13 = scmp.lt.s32.totalorder %s12, 0
      %s14 = scalar_select %p13, %s12, 0
      %s15 = smul.u32 9, %s14
      %p16 = scmp.lt.s32.totalorder %s15, 8
      %s17 = scalar_select %p16, %s15, 8
      %s18 = smul.addr %s17, 8
      %s19 = scalar_lea.vmem %s0, %s18
      %s20 = sadd.s32 0, 0
      %p21 = scmp.lt.s32.totalorder %s20, 0
      %s22 = scalar_select %p21, %s20, 0
      %s23 = smul.u32 9, %s22
    $region5: #{tpu_custom_call.1} parent=1 // pred_fallthru
      _
    // Predicated region
    $region6: #{tpu_custom_call.1} parent=1 // pred_check
      _
    $region7: #{tpu_custom_call.1} parent=1 // pred_check_branch
      %25 = sbr.rel (0) target = $region9
    $region8: #{tpu_custom_call.1} parent=1 // pred_region
      %s26 = sadd.s32 0, 0
      %p27 = scmp.lt.s32.totalorder %s26, 0
      %s28 = scalar_select %p27, %s26, 0
      %s29 = smul.u32 9, %s28
      %p30 = scmp.lt.s32.totalorder %s29, 8
      %s31 = scalar_select %p30, %s29, 8
      %s32 = smul.addr %s31, 8
      %s33 = scalar_lea.vmem %s1, %s32
      %s34 = sadd.s32 0, 0
      %p35 = scmp.lt.s32.totalorder %s34, 0
      %s36 = scalar_select %p35, %s34, 0
      %s37 = smul.u32 9, %s36
    $region9: #{tpu_custom_call.1} parent=1 // pred_fallthru
      _
    // Predicated region
    $region10: #{tpu_custom_call.1} parent=1 // pred_check
      _
    $region11: #{tpu_custom_call.1} parent=1 // pred_check_branch
      %39 = sbr.rel (0) target = $region13
    $region12: #{tpu_custom_call.1} parent=1 // pred_region
      %s40 = sadd.s32 0, 0
      %p41 = scmp.lt.s32.totalorder %s40, 0
      %s42 = scalar_select %p41, %s40, 0
      %s43 = smul.u32 9, %s42
      %p44 = scmp.lt.s32.totalorder %s43, 8
      %s45 = scalar_select %p44, %s43, 8
      %s46 = smul.addr %s45, 8
      %s47 = scalar_lea.vmem %s2, %s46
      %s48 = sadd.s32 0, 0
      %p49 = scmp.lt.s32.totalorder %s48, 0
      %s50 = scalar_select %p49, %s48, 0
      %s51 = smul.u32 9, %s50
    $region13: #{tpu_custom_call.1} parent=1 // pred_fallthru
      _
    // Predicated region
    $region14: #{tpu_custom_call.1} parent=1 // pred_check
      _
    $region15: #{tpu_custom_call.1} parent=1 // pred_check_branch
      %53 = sbr.rel (0) target = $region17
    $region16: #{tpu_custom_call.1} parent=1 // pred_region
      %s54 = sadd.s32 0, 0
      %p55 = scmp.lt.s32.totalorder %s54, 0
      %s56 = scalar_select %p55, %s54, 0
      %s57 = smul.u32 9, %s56
      %p58 = scmp.lt.s32.totalorder %s57, 8
      %s59 = scalar_select %p58, %s57, 8
      %s60 = smul.addr %s59, 8
      %s61 = scalar_lea.vmem %s3, %s60
      %s62 = sadd.s32 0, 0
      %p63 = scmp.lt.s32.totalorder %s62, 0
      %s64 = scalar_select %p63, %s62, 0
      %s65 = smul.u32 9, %s64
    $region17: #{tpu_custom_call.1} parent=1 // pred_fallthru
      _
    %s66 = sadd.s32 0, 0
    %p67 = scmp.lt.s32.totalorder %s66, 0
    %s68 = scalar_select %p67, %s66, 0
    %s69 = smul.u32 9, %s68
    %p70 = scmp.lt.s32.totalorder %s69, 8
    %s71 = scalar_select %p70, %s69, 8
    %s72 = smul.addr %s71, 8
    %s73 = scalar_lea.vmem %s0, %s72
    %s74 = sadd.s32 0, 0
    %p75 = scmp.lt.s32.totalorder %s74, 0
    %s76 = scalar_select %p75, %s74, 0
    %s77 = smul.u32 9, %s76
    %p78 = scmp.lt.s32.totalorder %s77, 8
    %s79 = scalar_select %p78, %s77, 8
    %s80 = smul.addr %s79, 8
    %s81 = scalar_lea.vmem %s1, %s80
    %s82 = sadd.s32 0, 0
    %p83 = scmp.lt.s32.totalorder %s82, 0
    %s84 = scalar_select %p83, %s82, 0
    %s85 = smul.u32 9, %s84
    %p86 = scmp.lt.s32.totalorder %s85, 8
    %s87 = scalar_select %p86, %s85, 8
    %s88 = smul.addr %s87, 8
    %s89 = scalar_lea.vmem %s2, %s88
    %s90 = sadd.s32 0, 0
    %p91 = scmp.lt.s32.totalorder %s90, 0
    %s92 = scalar_select %p91, %s90, 0
    %s93 = smul.u32 9, %s92
    %p94 = scmp.lt.s32.totalorder %s93, 8
    %s95 = scalar_select %p94, %s93, 8
    %s96 = smul.addr %s95, 8
    %s97 = scalar_lea.vmem %s3, %s96
    %s98 = sadd.s32 0, 0
    %p99 = scmp.lt.s32.totalorder %s98, 0
    %s100 = scalar_select %p99, %s98, 0
    %s101 = smul.u32 9, %s100
    %p102 = scmp.lt.s32.totalorder %s101, 8
    %s103 = scalar_select %p102, %s101, 8
    %s104 = smul.addr %s103, 8
    %s105 = scalar_lea.vmem %s0, %s104
    %s106 = sadd.s32 0, 0
    %p107 = scmp.lt.s32.totalorder %s106, 0
    %s108 = scalar_select %p107, %s106, 0
    %s109 = smul.u32 9, %s108
    %s110 = sadd.s32 0, 0
    %p111 = scmp.lt.s32.totalorder %s110, 0
    %s112 = scalar_select %p111, %s110, 0
    %s113 = smul.u32 9, %s112
    %p114 = scmp.lt.s32.totalorder %s113, 8
    %s115 = scalar_select %p114, %s113, 8
    %s116 = smul.addr %s115, 8
    %s117 = scalar_lea.vmem %s1, %s116
    %s118 = sadd.s32 0, 0
    %p119 = scmp.lt.s32.totalorder %s118, 0
    %s120 = scalar_select %p119, %s118, 0
    %s121 = smul.u32 9, %s120
    %s122 = sadd.s32 0, 0
    %p123 = scmp.lt.s32.totalorder %s122, 0
    %s124 = scalar_select %p123, %s122, 0
    %s125 = smul.u32 9, %s124
    %p126 = scmp.lt.s32.totalorder %s125, 8
    %s127 = scalar_select %p126, %s125, 8
    %s128 = smul.addr %s127, 8
    %s129 = scalar_lea.vmem %s2, %s128
    %s130 = sadd.s32 0, 0
    %p131 = scmp.lt.s32.totalorder %s130, 0
    %s132 = scalar_select %p131, %s130, 0
    %s133 = smul.u32 9, %s132
    %s134 = sadd.s32 0, 0
    %p135 = scmp.lt.s32.totalorder %s134, 0
    %s136 = scalar_select %p135, %s134, 0
    %s137 = smul.u32 9, %s136
    %p138 = scmp.lt.s32.totalorder %s137, 8
    %s139 = scalar_select %p138, %s137, 8
    %s140 = smul.addr %s139, 8
    %s141 = scalar_lea.vmem %s3, %s140
    %s142 = sadd.s32 0, 0
    %p143 = scmp.lt.s32.totalorder %s142, 0
    %s144 = scalar_select %p143, %s142, 0
    %s145 = smul.u32 9, %s144
    %s146 = sadd.s32 0, 0
    %p147 = scmp.eq.s32.totalorder 0, 0
    // Predicated region
    $region18: #{tpu_custom_call.1} parent=1 // pred_check
      %p148 = pneg %p147
    $region19: #{tpu_custom_call.1} parent=1 // pred_check_branch
      %150 = sbr.rel (%p148) target = $region21
    $region20: #{tpu_custom_call.1} parent=1 // pred_region
      %151 = vst [vmem:[#allocation2] sm:$0xff] 0.0
      %vm152 = vcmask 261120
      %153 = vst.msk [vmem:[#allocation3] sm:$0xff] %vm152, 0.0
    $region21: #{tpu_custom_call.1} parent=1 // pred_fallthru
      _
    %v154 = vld [vmem:[%s105] sm:$0xff]
    %v155 = vld [vmem:[%s105 + $0x8] sm:$0xff]
    %v156 = vld [vmem:[%s105 + $0x10] sm:$0xff]
    %v157 = vld [vmem:[%s105 + $0x18] sm:$0xff]
    %v158 = vld [vmem:[%s105 + $0x20] sm:$0xff]
    %v159 = vld [vmem:[%s105 + $0x28] sm:$0xff]
    %v160 = vld [vmem:[%s105 + $0x30] sm:$0xff]
    %v161 = vld [vmem:[%s105 + $0x38] sm:$0xff]
    %v162 = vld [vmem:[%s105 + $0x40] sm:$0xff]
    %v163 = vld [vmem:[%s117] sm:$0xff]
    %v164 = vld [vmem:[%s117 + $0x8] sm:$0xff]
    %v165 = vld [vmem:[%s117 + $0x10] sm:$0xff]
    %v166 = vld [vmem:[%s117 + $0x18] sm:$0xff]
    %v167 = vld [vmem:[%s117 + $0x20] sm:$0xff]
    %v168 = vld [vmem:[%s117 + $0x28] sm:$0xff]
    %v169 = vld [vmem:[%s117 + $0x30] sm:$0xff]
    %v170 = vld [vmem:[%s117 + $0x38] sm:$0xff]
    %v171 = vld [vmem:[%s117 + $0x40] sm:$0xff]
    %v172 = vsub.f32 %v154, %v163
    %v173 = vsub.f32 %v155, %v164
    %v174 = vsub.f32 %v156, %v165
    %v175 = vsub.f32 %v157, %v166
    %v176 = vsub.f32 %v158, %v167
    %v177 = vsub.f32 %v159, %v168
    %v178 = vsub.f32 %v160, %v169
    %v179 = vsub.f32 %v161, %v170
    %v180 = vsub.f32 %v162, %v171
    %v181 = vmul.f32 %v172, %v172
    %v182 = vmul.f32 %v173, %v173
    %v183 = vmul.f32 %v174, %v174
    %v184 = vmul.f32 %v175, %v175
    %v185 = vmul.f32 %v176, %v176
    %v186 = vmul.f32 %v177, %v177
    %v187 = vmul.f32 %v178, %v178
    %v188 = vmul.f32 %v179, %v179
    %v189 = vmul.f32 %v180, %v180
    %s190 = smul.u32 %s146, 72
    %v191 = vlaneseq
    %v192 = vshrl.u32 %v191, 7
    %v193 = vadd.s32 %v192, 8
    %v194 = vadd.s32 %v192, 16
    %v195 = vadd.s32 %v192, 24
    %v196 = vadd.s32 %v192, 32
    %v197 = vadd.s32 %v192, 40
    %v198 = vadd.s32 %v192, 48
    %v199 = vadd.s32 %v192, 56
    %v200 = vadd.s32 %v192, 64
    %v201 = vstv %s190
    %v202 = vadd.s32 %v201, %v192
    %v203 = vadd.s32 %v201, %v193
    %v204 = vadd.s32 %v201, %v194
    %v205 = vadd.s32 %v201, %v195
    %v206 = vadd.s32 %v201, %v196
    %v207 = vadd.s32 %v201, %v197
    %v208 = vadd.s32 %v201, %v198
    %v209 = vadd.s32 %v201, %v199
    %v210 = vadd.s32 %v201, %v200
    %vm211 = vcmp.lt.s32.totalorder %v202, 72
    %vm212 = vcmp.lt.s32.totalorder %v203, 72
    %vm213 = vcmp.lt.s32.totalorder %v204, 72
    %vm214 = vcmp.lt.s32.totalorder %v205, 72
    %vm215 = vcmp.lt.s32.totalorder %v206, 72
    %vm216 = vcmp.lt.s32.totalorder %v207, 72
    %vm217 = vcmp.lt.s32.totalorder %v208, 72
    %vm218 = vcmp.lt.s32.totalorder %v209, 72
    %vm219 = vcmp.lt.s32.totalorder %v210, 72
    %v220 = vsel %vm211, 1, 0
    %v221 = vsel %vm212, 1, 0
    %v222 = vsel %vm213, 1, 0
    %v223 = vsel %vm214, 1, 0
    %v224 = vsel %vm215, 1, 0
    %v225 = vsel %vm216, 1, 0
    %v226 = vsel %vm217, 1, 0
    %v227 = vsel %vm218, 1, 0
    %v228 = vsel %vm219, 1, 0
    %vm229 = vcmp.eq.s32.totalorder %v220, 1
    %vm230 = vcmp.eq.s32.totalorder %v221, 1
    %vm231 = vcmp.eq.s32.totalorder %v222, 1
    %vm232 = vcmp.eq.s32.totalorder %v223, 1
    %vm233 = vcmp.eq.s32.totalorder %v224, 1
    %vm234 = vcmp.eq.s32.totalorder %v225, 1
    %vm235 = vcmp.eq.s32.totalorder %v226, 1
    %vm236 = vcmp.eq.s32.totalorder %v227, 1
    %vm237 = vcmp.eq.s32.totalorder %v228, 1
    %v238 = vsel %vm229, %v181, 0.0
    %v239 = vsel %vm230, %v182, 0.0
    %v240 = vsel %vm231, %v183, 0.0
    %v241 = vsel %vm232, %v184, 0.0
    %v242 = vsel %vm233, %v185, 0.0
    %v243 = vsel %vm234, %v186, 0.0
    %v244 = vsel %vm235, %v187, 0.0
    %v245 = vsel %vm236, %v188, 0.0
    %v246 = vsel %vm237, %v189, 0.0
    %v247 = vld [vmem:[#allocation2] sm:$0xff]
    %v248 = vadd.f32 %v238, %v239
    %v249 = vadd.f32 %v248, %v240
    %v250 = vadd.f32 %v249, %v241
    %v251 = vadd.f32 %v250, %v242
    %v252 = vadd.f32 %v251, %v243
    %v253 = vadd.f32 %v252, %v244
    %v254 = vadd.f32 %v253, %v245
    %v255 = vadd.f32 %v254, %v246
    %v256 = vadd.f32 %v247, %v255
    %257 = vst [vmem:[#allocation2] sm:$0xff] %v256
    %v258 = vld [vmem:[%s141] sm:$0xff]
    %v259 = vld [vmem:[%s141 + $0x8] sm:$0xff]
    %v260 = vld [vmem:[%s141 + $0x10] sm:$0xff]
    %v261 = vld [vmem:[%s141 + $0x18] sm:$0xff]
    %v262 = vld [vmem:[%s141 + $0x20] sm:$0xff]
    %v263 = vld [vmem:[%s141 + $0x28] sm:$0xff]
    %v264 = vld [vmem:[%s141 + $0x30] sm:$0xff]
    %v265 = vld [vmem:[%s141 + $0x38] sm:$0xff]
    %v266 = vld [vmem:[%s141 + $0x40] sm:$0xff]
    %v267 = vld [vmem:[%s129] sm:$0xff]
    %v268 = vld [vmem:[%s129 + $0x8] sm:$0xff]
    %v269 = vld [vmem:[%s129 + $0x10] sm:$0xff]
    %v270 = vld [vmem:[%s129 + $0x18] sm:$0xff]
    %v271 = vld [vmem:[%s129 + $0x20] sm:$0xff]
    %v272 = vld [vmem:[%s129 + $0x28] sm:$0xff]
    %v273 = vld [vmem:[%s129 + $0x30] sm:$0xff]
    %v274 = vld [vmem:[%s129 + $0x38] sm:$0xff]
    %v275 = vld [vmem:[%s129 + $0x40] sm:$0xff]
    %v276 = vadd.f32 %v258, 1.0
    %v277 = vadd.f32 %v259, 1.0
    %v278 = vadd.f32 %v260, 1.0
    %v279 = vadd.f32 %v261, 1.0
    %v280 = vadd.f32 %v262, 1.0
    %v281 = vadd.f32 %v263, 1.0
    %v282 = vadd.f32 %v264, 1.0
    %v283 = vadd.f32 %v265, 1.0
    %v284 = vadd.f32 %v266, 1.0
    %v285 = vmul.f32 %v267, %v267
    %v286 = vmul.f32 %v268, %v268
    %v287 = vmul.f32 %v269, %v269
    %v288 = vmul.f32 %v270, %v270
    %v289 = vmul.f32 %v271, %v271
    %v290 = vmul.f32 %v272, %v272
    %v291 = vmul.f32 %v273, %v273
    %v292 = vmul.f32 %v274, %v274
    %v293 = vmul.f32 %v275, %v275
    %v294 = vsub.f32 %v276, %v285
    %v295 = vsub.f32 %v277, %v286
    %v296 = vsub.f32 %v278, %v287
    %v297 = vsub.f32 %v279, %v288
    %v298 = vsub.f32 %v280, %v289
    %v299 = vsub.f32 %v281, %v290
    %v300 = vsub.f32 %v282, %v291
    %v301 = vsub.f32 %v283, %v292
    %v302 = vsub.f32 %v284, %v293
    %v303 = vmul.f32 %v258, 1.442695
    %v304 = vpow.pop %v303
    %v305 = vmul.f32 %v259, 1.442695
    %v306 = vpow.pop %v305
    %v307 = vmul.f32 %v260, 1.442695
    %v308 = vpow.pop %v307
    %v309 = vmul.f32 %v261, 1.442695
    %v310 = vpow.pop %v309
    %v311 = vmul.f32 %v262, 1.442695
    %v312 = vpow.pop %v311
    %v313 = vmul.f32 %v263, 1.442695
    %v314 = vpow.pop %v313
    %v315 = vmul.f32 %v264, 1.442695
    %v316 = vpow.pop %v315
    %v317 = vmul.f32 %v265, 1.442695
    %v318 = vpow.pop %v317
    %v319 = vmul.f32 %v266, 1.442695
    %v320 = vpow.pop %v319
    %v321 = vsub.f32 %v294, %v304
    %v322 = vsub.f32 %v295, %v306
    %v323 = vsub.f32 %v296, %v308
    %v324 = vsub.f32 %v297, %v310
    %v325 = vsub.f32 %v298, %v312
    %v326 = vsub.f32 %v299, %v314
    %v327 = vsub.f32 %v300, %v316
    %v328 = vsub.f32 %v301, %v318
    %v329 = vsub.f32 %v302, %v320
    %v330 = vsel %vm229, %v321, 0.0
    %v331 = vsel %vm230, %v322, 0.0
    %v332 = vsel %vm231, %v323, 0.0
    %v333 = vsel %vm232, %v324, 0.0
    %v334 = vsel %vm233, %v325, 0.0
    %v335 = vsel %vm234, %v326, 0.0
    %v336 = vsel %vm235, %v327, 0.0
    %v337 = vsel %vm236, %v328, 0.0
    %v338 = vsel %vm237, %v329, 0.0
    %v339 = vld [vmem:[#allocation3] sm:$0xff]
    %vm340 = vcmask 261120
    %v341 = vsel %vm340, %v330, 0.0
    %v342 = vsel %vm340, %v331, 0.0
    %v343 = vadd.f32 %v341, %v342
    %v344 = vsel %vm340, %v332, 0.0
    %v345 = vadd.f32 %v343, %v344
    %v346 = vsel %vm340, %v333, 0.0
    %v347 = vadd.f32 %v345, %v346
    %v348 = vsel %vm340, %v334, 0.0
    %v349 = vadd.f32 %v347, %v348
    %v350 = vsel %vm340, %v335, 0.0
    %v351 = vadd.f32 %v349, %v350
    %v352 = vsel %vm340, %v336, 0.0
    %v353 = vadd.f32 %v351, %v352
    %v354 = vsel %vm340, %v337, 0.0
    %v355 = vadd.f32 %v353, %v354
    %v356 = vsel %vm340, %v338, 0.0
    %v357 = vadd.f32 %v355, %v356
    %v358 = vadd.f32 %v339, %v357
    %359 = vst.msk [vmem:[#allocation3] sm:$0xff] %vm340, %v358
    // Predicated region
    $region22: #{tpu_custom_call.1} parent=1 // pred_check
      %p360 = pneg %p147
    $region23: #{tpu_custom_call.1} parent=1 // pred_check_branch
      %362 = sbr.rel (%p360) target = $region25
    $region24: #{tpu_custom_call.1} parent=1 // pred_region
      %v363 = vld [vmem:[#allocation2] sm:$0xff]
      %364 = vadd.xlane.f32.xlu0 %v363
      %v365 = vpop.xlane.xlu0 %364
      %v366 = vrot.slane %v365, 4
      %v367 = vadd.f32 %v365, %v366
      %v368 = vrot.slane %v367, 2
      %v369 = vadd.f32 %v367, %v368
      %v370 = vrot.slane %v369, 1
      %v371 = vadd.f32 %v369, %v370
      %s372 = vtos %v371
      %v373 = vld [vmem:[#allocation3] sm:$0xff]
      %v374 = vsel %vm340, %v373, 0.0
      %375 = vadd.xlane.f32.xlu0 %v374
      %v376 = vpop.xlane.xlu0 %375
      %v377 = vrot.slane %v376, 4
      %v378 = vadd.f32 %v376, %v377
      %v379 = vrot.slane %v378, 2
      %v380 = vadd.f32 %v378, %v379
      %v381 = vrot.slane %v380, 1
      %v382 = vadd.f32 %v380, %v381
      %s383 = vtos %v382
      %s384 = smul.f32 %s383, 0.5
      %s385 = ssub.f32 %s372, %s384
      %s386 = scalar_lea.smem [#allocation4], 0
      %387 = sst [smem:[%s386]] %s385
    $region25: #{tpu_custom_call.1} parent=1 // pred_fallthru
      _
    // Predicated region
    $region26: #{tpu_custom_call.1} parent=1 // pred_check
      _
    $region27: #{tpu_custom_call.1} parent=1 // pred_check_branch
      %389 = sbr.rel (0) target = $region29
    $region28: #{tpu_custom_call.1} parent=1 // pred_region
      %391 = vsyncadd [#allocation5], 0
      %s393 = sshll.u32 %s4, 4
      %s394 = int_to_ptr.hbm [resolvable:$true] %s393
      %396 = dma.smem_to_hbm [#allocation4], 16, %s394, [#allocation5]
    $region29: #{tpu_custom_call.1} parent=1 // pred_fallthru
      _
    // Predicated region
    $region30: #{tpu_custom_call.1} parent=1 // pred_check
      _
    $region31: #{tpu_custom_call.1} parent=1 // pred_check_branch
      %398 = sbr.rel (0) target = $region33
    $region32: #{tpu_custom_call.1} parent=1 // pred_region
      %400 = dma.done [#allocation5], 16
    $region33: #{tpu_custom_call.1} parent=1 // pred_fallthru
      _
    %401 = sfence
    %402 = vsyncpa [#allocation5], 1

</llo_original>
